<compile_context>
chip_gen: v5e
topology: v5e:2x2
jax: 0.10.0
libtpu: 0.0.40
codegen_flags: <defaults>
</compile_context>

<pallas_src>
import functools

import jax
import jax.numpy as jnp
from jax import lax
from jax.experimental import pallas as pl
from jax.experimental.pallas import tpu as pltpu

EPS = 1e-5
MASK_CHANNELS = 11     # mask = (sum over the first 11 channels != 0)
_LANE = 128


# ----------------------------------------------------------------------------
# Hardware-aware sizing helpers
# ----------------------------------------------------------------------------
def _vmem_limit_bytes() -> int:
    """Scoped-VMEM budget per generation (v7x has 64 MiB physical, others 128)."""
    cap = None
    try:
        info = pltpu.get_tpu_info()
        cap = getattr(info, "vmem_capacity_bytes", None)
    except Exception:
        cap = None
    if cap is None:
        cap = 64 * 1024 * 1024                  # assume the smaller (v7x) VMEM
    if cap >= 128 * 1024 * 1024:
        return 64 * 1024 * 1024                 # v5e / v6e
    return 32 * 1024 * 1024                     # v7x-class (64 MiB physical)


def _round_up(v: int, m: int) -> int:
    return ((v + m - 1) // m) * m


def _choose_blocks(n: int, c: int, hwp: int, max_block_bytes: int):
    """Pick (NB, T): lane tile T (multiple of 128 dividing hwp) and batch-group
    size NB (divisor of n) so each x block holds ~max_block_bytes of f32."""
    max_elems = max(max_block_bytes // 4, c * _LANE)
    if c * hwp <= max_elems:
        t = hwp
        nb_cap = max(1, min(n, max_elems // (c * hwp)))
        nb = 1
        for d in range(nb_cap, 0, -1):
            if n % d == 0:
                nb = d
                break
    else:
        nb = 1
        t = max((max_elems // c // _LANE) * _LANE, _LANE)
        while t > _LANE and hwp % t != 0:
            t -= _LANE
        if hwp % t != 0:
            t = _LANE
    return nb, t


# ----------------------------------------------------------------------------
# Kernels
# ----------------------------------------------------------------------------
def _stats_kernel(x_ref, cnt_ref, sum_ref, sumsq_ref):
    """Per-batch-group masked (count, sum, sum-of-squares) partials.

    Grid = (batch groups [parallel], spatial tiles [arbitrary]).  The output
    block index depends only on the group axis, so the partials stay resident
    in VMEM across the spatial-tile axis (init at t==0, flush on group change).
    """
    t = pl.program_id(1)

    @pl.when(t == 0)
    def _init():
        cnt_ref[...] = jnp.zeros_like(cnt_ref)
        sum_ref[...] = jnp.zeros_like(sum_ref)
        sumsq_ref[...] = jnp.zeros_like(sumsq_ref)

    x = x_ref[...].astype(jnp.float32)                        # (NB, C, T)
    mc = min(MASK_CHANNELS, x.shape[1])
    ch_sum = jnp.sum(x[:, 0:mc, :], axis=1, keepdims=True)    # (NB, 1, T)
    mask = (ch_sum != 0.0).astype(jnp.float32)
    xm = x * mask

    # Lane reduce first (keepdims), then fold the batch-group dim.
    m_l = jnp.sum(mask, axis=2, keepdims=True)                # (NB, 1, 1)
    s_l = jnp.sum(xm, axis=2, keepdims=True)                  # (NB, C, 1)
    q_l = jnp.sum(xm * x, axis=2, keepdims=True)              # (NB, C, 1)
    cnt_ref[...] += jnp.sum(m_l, axis=0, keepdims=True)       # (1, 1, 1)
    sum_ref[...] += jnp.sum(s_l, axis=0, keepdims=True)       # (1, C, 1)
    sumsq_ref[...] += jnp.sum(q_l, axis=0, keepdims=True)     # (1, C, 1)


def _norm_kernel(x_ref, scale_ref, shift_ref, o_ref):
    """y = x * scale + shift; lane-dense blocks, output in the input dtype."""
    x = x_ref[...].astype(jnp.float32)                        # (NB, C, T)
    o_ref[...] = (x * scale_ref[...] + shift_ref[...]).astype(o_ref.dtype)


def _fused_kernel(x_ref, gamma_ref, beta_ref, o_ref):
    """Single-pass path for activations that fit in VMEM: stats + normalize
    over the same resident x block (2x|x| HBM traffic instead of 3x)."""
    n_img, c = x_ref.shape[0], x_ref.shape[1]
    mc = min(MASK_CHANNELS, c)

    cnt = jnp.zeros((1, 1), jnp.float32)
    s = jnp.zeros((c, 1), jnp.float32)
    ss = jnp.zeros((c, 1), jnp.float32)
    for n in range(n_img):                                    # small static unroll
        x = x_ref[n].astype(jnp.float32)                      # (C, HWp)
        mask = (jnp.sum(x[0:mc, :], axis=0, keepdims=True) != 0.0).astype(jnp.float32)
        xm = x * mask
        cnt = cnt + jnp.sum(mask, axis=1, keepdims=True)
        s = s + jnp.sum(xm, axis=1, keepdims=True)
        ss = ss + jnp.sum(xm * x, axis=1, keepdims=True)

    denom = cnt + EPS
    mean = s / denom
    # Exact centered variance: sum((x - mean)^2 * m) / (count + eps).
    var = jnp.maximum((ss - 2.0 * mean * s + mean * mean * cnt) / denom, 0.0)
    scale = gamma_ref[...] * lax.rsqrt(var + EPS)             # (C, 1)
    shift = beta_ref[...] - mean * scale

    for n in range(n_img):
        xn = x_ref[n].astype(jnp.float32)
        o_ref[n] = (xn * scale + shift).astype(o_ref.dtype)


# ----------------------------------------------------------------------------
# Wrapper
# ----------------------------------------------------------------------------
def masked_batch_norm_2d(x_nchw, gamma, beta, *,
                         max_block_bytes: int = 2 * 1024 * 1024,
                         allow_fused: bool = True,
                         donate_x: bool = False):
    """Training-mode forward of MaskedBatchNorm2d.

    x_nchw: (N, C, H, W) in any float dtype; gamma/beta: (C,).
    Returns y with the same shape and dtype as x_nchw.
    Set donate_x=True (under jit, with x dead afterwards) to alias y over x.
    """
    N, C, H, W = x_nchw.shape
    HW = H * W
    dtype = x_nchw.dtype
    itemsize = jnp.dtype(dtype).itemsize
    vmem_limit = _vmem_limit_bytes()

    # Native-dtype, lane-aligned layout: (N, C, HWp) with HWp a multiple of 128.
    # Zero padding is inert for the stats (channel-sum mask is 0 there).
    HWp = _round_up(max(HW, _LANE), _LANE)
    x3 = x_nchw.reshape(N, C, HW)
    if HWp != HW:
        x3 = jnp.pad(x3, ((0, 0), (0, 0), (0, HWp - HW)))

    gamma2 = gamma.reshape(C, 1).astype(jnp.float32)
    beta2 = beta.reshape(C, 1).astype(jnp.float32)
    aliases = {0: 0} if donate_x else {}

    # ---------------- fused single-pass path (small/medium activations) -----
    fused_bytes = 4 * N * C * HWp * itemsize + 4 * C * HWp * 4
    if allow_fused and N <= 64 and fused_bytes <= vmem_limit // 2:
        y3 = pl.pallas_call(
            _fused_kernel,
            out_shape=jax.ShapeDtypeStruct((N, C, HWp), dtype),
            grid_spec=pltpu.PrefetchScalarGridSpec(
                num_scalar_prefetch=0,
                grid=(1,),
                in_specs=[
                    pl.BlockSpec((N, C, HWp), lambda i: (0, 0, 0)),
                    pl.BlockSpec((C, 1), lambda i: (0, 0)),
                    pl.BlockSpec((C, 1), lambda i: (0, 0)),
                ],
                out_specs=pl.BlockSpec((N, C, HWp), lambda i: (0, 0, 0)),
            ),
            compiler_params=pltpu.CompilerParams(
                dimension_semantics=("arbitrary",),
                vmem_limit_bytes=vmem_limit),
            input_output_aliases=aliases,
        )(x3, gamma2, beta2)
        if HWp != HW:
            y3 = y3[:, :, :HW]
        return y3.reshape(N, C, H, W)

    # ---------------- two-pass path ------------------------------------------
    eff_block_bytes = min(max_block_bytes, vmem_limit // 8)
    NB, T = _choose_blocks(N, C, HWp, eff_block_bytes)
    G = N // NB
    num_t = HWp // T

    reduce_params = pltpu.CompilerParams(
        dimension_semantics=("parallel", "arbitrary"),
        vmem_limit_bytes=vmem_limit)
    elem_params = pltpu.CompilerParams(
        dimension_semantics=("parallel", "parallel"),
        vmem_limit_bytes=vmem_limit)

    # Pass 1: per-group partial masked statistics (megacore-parallel over groups).
    cnt_p, sum_p, sumsq_p = pl.pallas_call(
        _stats_kernel,
        out_shape=(jax.ShapeDtypeStruct((G, 1, 1), jnp.float32),
                   jax.ShapeDtypeStruct((G, C, 1), jnp.float32),
                   jax.ShapeDtypeStruct((G, C, 1), jnp.float32)),
        grid_spec=pltpu.PrefetchScalarGridSpec(
            num_scalar_prefetch=0,
            grid=(G, num_t),
            in_specs=[pl.BlockSpec((NB, C, T), lambda g, t: (g, 0, t))],
            out_specs=(pl.BlockSpec((1, 1, 1), lambda g, t: (g, 0, 0)),
                       pl.BlockSpec((1, C, 1), lambda g, t: (g, 0, 0)),
                       pl.BlockSpec((1, C, 1), lambda g, t: (g, 0, 0))),
        ),
        compiler_params=reduce_params,
    )(x3)

    # Tiny per-channel combine + finalize in plain JAX (exact centered variance,
    # matching the reference's sum((x - mean)^2 * m) / (count + eps)).
    cnt = jnp.sum(cnt_p)                                      # scalar
    s = jnp.sum(sum_p, axis=0)                                # (C, 1)
    ss = jnp.sum(sumsq_p, axis=0)                             # (C, 1)
    denom = cnt + EPS
    mean = s / denom
    var = jnp.maximum((ss - 2.0 * mean * s + mean * mean * cnt) / denom, 0.0)
    scale = gamma2 * lax.rsqrt(var + EPS)                     # (C, 1)
    shift = beta2 - mean * scale

    # Pass 2: elementwise normalize, lane-dense blocks in the input dtype.
    y3 = pl.pallas_call(
        _norm_kernel,
        out_shape=jax.ShapeDtypeStruct((N, C, HWp), dtype),
        grid_spec=pltpu.PrefetchScalarGridSpec(
            num_scalar_prefetch=0,
            grid=(G, num_t),
            in_specs=[pl.BlockSpec((NB, C, T), lambda g, t: (g, 0, t)),
                      pl.BlockSpec((C, 1), lambda g, t: (0, 0)),
                      pl.BlockSpec((C, 1), lambda g, t: (0, 0))],
            out_specs=pl.BlockSpec((NB, C, T), lambda g, t: (g, 0, t)),
        ),
        compiler_params=elem_params,
        input_output_aliases=aliases,
    )(x3, scale, shift)

    if HWp != HW:
        y3 = y3[:, :, :HW]
    return y3.reshape(N, C, H, W)


# ----------------------------------------------------------------------------
# Reference + self-test
# ----------------------------------------------------------------------------
def _reference(x, gamma, beta):
    """Pure-JAX replica of the PyTorch forward (training mode), in f32."""
    xf = x.astype(jnp.float32)
    mask = (jnp.sum(xf[:, :MASK_CHANNELS, :, :], axis=1, keepdims=True) != 0
            ).astype(jnp.float32)
    denom = jnp.sum(mask, axis=(0, 2, 3)) + EPS
    mean = jnp.sum(xf * mask, axis=(0, 2, 3)) / denom
    var = jnp.sum((xf - mean.reshape(1, -1, 1, 1)) ** 2 * mask,
                  axis=(0, 2, 3)) / denom
    y = (xf - mean.reshape(1, -1, 1, 1)) / jnp.sqrt(var.reshape(1, -1, 1, 1) + EPS)
    return y * gamma.reshape(1, -1, 1, 1) + beta.reshape(1, -1, 1, 1)


if __name__ == "__main__":
    key = jax.random.PRNGKey(0)

    def run_case(key, shape, dtype, tol, **kw):
        N, C, H, W = shape
        kx, key = jax.random.split(key)
        x = jax.random.normal(kx, shape, dtype=jnp.float32)
        # Zero a spatial stripe of the first 11 channels so the mask has real 0s.
        x = x.at[:, :MASK_CHANNELS, : max(1, H // 4), :].set(0.0)
        x = x.astype(dtype)
        gamma = jnp.linspace(0.5, 1.5, C, dtype=jnp.float32)
        beta = jnp.linspace(-0.25, 0.25, C, dtype=jnp.float32)

        ref = _reference(x, gamma, beta)
        fn = jax.jit(functools.partial(masked_batch_norm_2d, **kw))
        out = jax.block_until_ready(fn(x, gamma, beta))

        assert out.shape == shape, f"shape mismatch {out.shape} vs {shape}"
        assert out.dtype == dtype, f"dtype mismatch {out.dtype} vs {dtype}"
        assert jnp.allclose(out.astype(jnp.float32), ref, atol=tol, rtol=tol), \
            f"value mismatch for {shape} {dtype} {kw}"
        return key

    # 1) Default path (fused single-pass, f32).
    key = run_case(key, (2, 16, 16, 16), jnp.float32, 1e-4)
    # 2) Two-pass path with spatial padding (240 -> 256), multi-tile
    #    accumulation over the HW axis, and donated/aliased output.
    key = run_case(key, (2, 16, 12, 20), jnp.float32, 1e-4,
                   allow_fused=False, max_block_bytes=8 * 1024, donate_x=True)
    # 3) Two-pass path with a batch-group block (NB > 1).
    key = run_case(key, (4, 16, 8, 16), jnp.float32, 1e-4,
                   allow_fused=False, max_block_bytes=32 * 1024)
    # 4) Native bf16 I/O through the two-pass path.
    key = run_case(key, (2, 16, 16, 16), jnp.bfloat16, 3e-2, allow_fused=False)
    # 5) Native bf16 I/O through the fused path.
    key = run_case(key, (2, 16, 16, 16), jnp.bfloat16, 3e-2)

    print("KERNEL_OK")
</pallas_src>

<mosaic_0001>
module attributes {stable_mosaic.version = 11 : i64} {
  func.func @_fused_kernel(%arg0: i32, %arg1: memref<2x16x256xf32, #tpu.memory_space<vmem>>, %arg2: memref<16x1xf32, #tpu.memory_space<vmem>>, %arg3: memref<16x1xf32, #tpu.memory_space<vmem>>, %arg4: memref<2x16x256xf32, #tpu.memory_space<vmem>>) attributes {dimension_semantics = [#tpu.dimension_semantics<arbitrary>], iteration_bounds = array<i64: 1>, scalar_prefetch = 0 : i64, scratch_operands = 0 : i64, tpu.core_type = #tpu.core_type<tc>, window_params = [{pipeline_mode = #tpu.pipeline_mode<synchronous>, transform_indices = @transform_0, window_bounds = array<i64: 2, 16, 256>}, {pipeline_mode = #tpu.pipeline_mode<synchronous>, transform_indices = @transform_1, window_bounds = array<i64: 16, 1>}, {pipeline_mode = #tpu.pipeline_mode<synchronous>, transform_indices = @transform_2, window_bounds = array<i64: 16, 1>}, {pipeline_mode = #tpu.pipeline_mode<synchronous>, transform_indices = @transform_3, window_bounds = array<i64: 2, 16, 256>}]} {
    %cst = arith.constant 0.000000e+00 : f32
    %0 = vector.broadcast %cst : f32 to vector<1x1xf32>
    %cst_0 = arith.constant 0.000000e+00 : f32
    %1 = vector.broadcast %cst_0 : f32 to vector<16x1xf32>
    %cst_1 = arith.constant 0.000000e+00 : f32
    %2 = vector.broadcast %cst_1 : f32 to vector<16x1xf32>
    %c0 = arith.constant 0 : index
    %c0_2 = arith.constant 0 : index
    %c0_3 = arith.constant 0 : index
    %3 = vector.load %arg1[%c0, %c0_2, %c0_3] : memref<2x16x256xf32, #tpu.memory_space<vmem>>, vector<1x16x256xf32>
    %4 = vector.shape_cast %3 : vector<1x16x256xf32> to vector<16x256xf32>
    %5 = vector.extract_strided_slice %4 {offsets = [0, 0], sizes = [11, 256], strides = [1, 1]} : vector<16x256xf32> to vector<11x256xf32>
    %cst_4 = arith.constant dense<0.000000e+00> : vector<256xf32>
    %6 = vector.multi_reduction <add>, %5, %cst_4 [0] : vector<11x256xf32> to vector<256xf32>
    %7 = vector.shape_cast %6 : vector<256xf32> to vector<1x256xf32>
    %cst_5 = arith.constant 0.000000e+00 : f32
    %8 = vector.broadcast %cst_5 : f32 to vector<1x256xf32>
    %9 = arith.cmpf one, %7, %8 : vector<1x256xf32>
    %10 = arith.extui %9 : vector<1x256xi1> to vector<1x256xi32>
    %11 = arith.sitofp %10 : vector<1x256xi32> to vector<1x256xf32>
    %12 = vector.broadcast %11 : vector<1x256xf32> to vector<16x256xf32>
    %13 = arith.mulf %4, %12 : vector<16x256xf32>
    %cst_6 = arith.constant dense<0.000000e+00> : vector<1xf32>
    %14 = vector.multi_reduction <add>, %11, %cst_6 [1] : vector<1x256xf32> to vector<1xf32>
    %15 = vector.shape_cast %14 : vector<1xf32> to vector<1x1xf32>
    %16 = arith.addf %0, %15 : vector<1x1xf32>
    %cst_7 = arith.constant dense<0.000000e+00> : vector<16xf32>
    %17 = vector.multi_reduction <add>, %13, %cst_7 [1] : vector<16x256xf32> to vector<16xf32>
    %18 = vector.shape_cast %17 : vector<16xf32> to vector<16x1xf32>
    %19 = arith.addf %1, %18 : vector<16x1xf32>
    %20 = arith.mulf %13, %4 : vector<16x256xf32>
    %cst_8 = arith.constant dense<0.000000e+00> : vector<16xf32>
    %21 = vector.multi_reduction <add>, %20, %cst_8 [1] : vector<16x256xf32> to vector<16xf32>
    %22 = vector.shape_cast %21 : vector<16xf32> to vector<16x1xf32>
    %23 = arith.addf %2, %22 : vector<16x1xf32>
    %c1 = arith.constant 1 : index
    %c0_9 = arith.constant 0 : index
    %c0_10 = arith.constant 0 : index
    %24 = vector.load %arg1[%c1, %c0_9, %c0_10] : memref<2x16x256xf32, #tpu.memory_space<vmem>>, vector<1x16x256xf32>
    %25 = vector.shape_cast %24 : vector<1x16x256xf32> to vector<16x256xf32>
    %26 = vector.extract_strided_slice %25 {offsets = [0, 0], sizes = [11, 256], strides = [1, 1]} : vector<16x256xf32> to vector<11x256xf32>
    %cst_11 = arith.constant dense<0.000000e+00> : vector<256xf32>
    %27 = vector.multi_reduction <add>, %26, %cst_11 [0] : vector<11x256xf32> to vector<256xf32>
    %28 = vector.shape_cast %27 : vector<256xf32> to vector<1x256xf32>
    %cst_12 = arith.constant 0.000000e+00 : f32
    %29 = vector.broadcast %cst_12 : f32 to vector<1x256xf32>
    %30 = arith.cmpf one, %28, %29 : vector<1x256xf32>
    %31 = arith.extui %30 : vector<1x256xi1> to vector<1x256xi32>
    %32 = arith.sitofp %31 : vector<1x256xi32> to vector<1x256xf32>
    %33 = vector.broadcast %32 : vector<1x256xf32> to vector<16x256xf32>
    %34 = arith.mulf %25, %33 : vector<16x256xf32>
    %cst_13 = arith.constant dense<0.000000e+00> : vector<1xf32>
    %35 = vector.multi_reduction <add>, %32, %cst_13 [1] : vector<1x256xf32> to vector<1xf32>
    %36 = vector.shape_cast %35 : vector<1xf32> to vector<1x1xf32>
    %37 = arith.addf %16, %36 : vector<1x1xf32>
    %cst_14 = arith.constant dense<0.000000e+00> : vector<16xf32>
    %38 = vector.multi_reduction <add>, %34, %cst_14 [1] : vector<16x256xf32> to vector<16xf32>
    %39 = vector.shape_cast %38 : vector<16xf32> to vector<16x1xf32>
    %40 = arith.addf %19, %39 : vector<16x1xf32>
    %41 = arith.mulf %34, %25 : vector<16x256xf32>
    %cst_15 = arith.constant dense<0.000000e+00> : vector<16xf32>
    %42 = vector.multi_reduction <add>, %41, %cst_15 [1] : vector<16x256xf32> to vector<16xf32>
    %43 = vector.shape_cast %42 : vector<16xf32> to vector<16x1xf32>
    %44 = arith.addf %23, %43 : vector<16x1xf32>
    %cst_16 = arith.constant 9.99999974E-6 : f32
    %45 = vector.broadcast %cst_16 : f32 to vector<1x1xf32>
    %46 = arith.addf %37, %45 : vector<1x1xf32>
    %47 = vector.broadcast %46 : vector<1x1xf32> to vector<16x1xf32>
    %48 = arith.divf %40, %47 : vector<16x1xf32>
    %cst_17 = arith.constant 2.000000e+00 : f32
    %49 = vector.broadcast %cst_17 : f32 to vector<16x1xf32>
    %50 = arith.mulf %49, %48 : vector<16x1xf32>
    %51 = arith.mulf %50, %40 : vector<16x1xf32>
    %52 = arith.subf %44, %51 : vector<16x1xf32>
    %53 = arith.mulf %48, %48 : vector<16x1xf32>
    %54 = vector.broadcast %37 : vector<1x1xf32> to vector<16x1xf32>
    %55 = arith.mulf %53, %54 : vector<16x1xf32>
    %56 = arith.addf %52, %55 : vector<16x1xf32>
    %57 = vector.broadcast %46 : vector<1x1xf32> to vector<16x1xf32>
    %58 = arith.divf %56, %57 : vector<16x1xf32>
    %cst_18 = arith.constant 0.000000e+00 : f32
    %59 = vector.broadcast %cst_18 : f32 to vector<16x1xf32>
    %60 = arith.maximumf %58, %59 : vector<16x1xf32>
    %c0_19 = arith.constant 0 : index
    %c0_20 = arith.constant 0 : index
    %61 = vector.load %arg2[%c0_19, %c0_20] : memref<16x1xf32, #tpu.memory_space<vmem>>, vector<16x1xf32>
    %cst_21 = arith.constant 9.99999974E-6 : f32
    %62 = vector.broadcast %cst_21 : f32 to vector<16x1xf32>
    %63 = arith.addf %60, %62 : vector<16x1xf32>
    %64 = math.rsqrt %63 : vector<16x1xf32>
    %65 = arith.mulf %61, %64 : vector<16x1xf32>
    %c0_22 = arith.constant 0 : index
    %c0_23 = arith.constant 0 : index
    %66 = vector.load %arg3[%c0_22, %c0_23] : memref<16x1xf32, #tpu.memory_space<vmem>>, vector<16x1xf32>
    %67 = arith.mulf %48, %65 : vector<16x1xf32>
    %68 = arith.subf %66, %67 : vector<16x1xf32>
    %c0_24 = arith.constant 0 : index
    %c0_25 = arith.constant 0 : index
    %c0_26 = arith.constant 0 : index
    %69 = vector.load %arg1[%c0_24, %c0_25, %c0_26] : memref<2x16x256xf32, #tpu.memory_space<vmem>>, vector<1x16x256xf32>
    %70 = vector.shape_cast %69 : vector<1x16x256xf32> to vector<16x256xf32>
    %71 = vector.broadcast %65 : vector<16x1xf32> to vector<16x256xf32>
    %72 = arith.mulf %70, %71 : vector<16x256xf32>
    %73 = vector.broadcast %68 : vector<16x1xf32> to vector<16x256xf32>
    %74 = arith.addf %72, %73 : vector<16x256xf32>
    %c0_27 = arith.constant 0 : index
    %c0_28 = arith.constant 0 : index
    %c0_29 = arith.constant 0 : index
    %75 = vector.load %arg4[%c0_27, %c0_28, %c0_29] : memref<2x16x256xf32, #tpu.memory_space<vmem>>, vector<1x16x256xf32>
    %76 = vector.shape_cast %75 : vector<1x16x256xf32> to vector<16x256xf32>
    %77 = vector.shape_cast %74 : vector<16x256xf32> to vector<1x16x256xf32>
    tpu.vector_store %arg4[%c0_27, %c0_28, %c0_29], %77 {strides = array<i32>} : memref<2x16x256xf32, #tpu.memory_space<vmem>>, vector<1x16x256xf32>,
    %c1_30 = arith.constant 1 : index
    %c0_31 = arith.constant 0 : index
    %c0_32 = arith.constant 0 : index
    %78 = vector.load %arg1[%c1_30, %c0_31, %c0_32] : memref<2x16x256xf32, #tpu.memory_space<vmem>>, vector<1x16x256xf32>
    %79 = vector.shape_cast %78 : vector<1x16x256xf32> to vector<16x256xf32>
    %80 = vector.broadcast %65 : vector<16x1xf32> to vector<16x256xf32>
    %81 = arith.mulf %79, %80 : vector<16x256xf32>
    %82 = vector.broadcast %68 : vector<16x1xf32> to vector<16x256xf32>
    %83 = arith.addf %81, %82 : vector<16x256xf32>
    %c1_33 = arith.constant 1 : index
    %c0_34 = arith.constant 0 : index
    %c0_35 = arith.constant 0 : index
    %84 = vector.load %arg4[%c1_33, %c0_34, %c0_35] : memref<2x16x256xf32, #tpu.memory_space<vmem>>, vector<1x16x256xf32>
    %85 = vector.shape_cast %84 : vector<1x16x256xf32> to vector<16x256xf32>
    %86 = vector.shape_cast %83 : vector<16x256xf32> to vector<1x16x256xf32>
    tpu.vector_store %arg4[%c1_33, %c0_34, %c0_35], %86 {strides = array<i32>} : memref<2x16x256xf32, #tpu.memory_space<vmem>>, vector<1x16x256xf32>,
    return
  }
  func.func @transform_0(%arg0: i32) -> (i32, i32, i32) {
    %c0_i32 = arith.constant 0 : i32
    %c0_i32_0 = arith.constant 0 : i32
    %c0_i32_1 = arith.constant 0 : i32
    %c0_i32_2 = arith.constant 0 : i32
    return %c0_i32, %c0_i32_0, %c0_i32_1 : i32, i32, i32
  }
  func.func @transform_1(%arg0: i32) -> (i32, i32) {
    %c0_i32 = arith.constant 0 : i32
    %c0_i32_0 = arith.constant 0 : i32
    %c0_i32_1 = arith.constant 0 : i32
    return %c0_i32, %c0_i32_0 : i32, i32
  }
  func.func @transform_2(%arg0: i32) -> (i32, i32) {
    %c0_i32 = arith.constant 0 : i32
    %c0_i32_0 = arith.constant 0 : i32
    %c0_i32_1 = arith.constant 0 : i32
    return %c0_i32, %c0_i32_0 : i32, i32
  }
  func.func @transform_3(%arg0: i32) -> (i32, i32, i32) {
    %c0_i32 = arith.constant 0 : i32
    %c0_i32_0 = arith.constant 0 : i32
    %c0_i32_1 = arith.constant 0 : i32
    %c0_i32_2 = arith.constant 0 : i32
    return %c0_i32, %c0_i32_0, %c0_i32_1 : i32, i32, i32
  }
}

</mosaic_0001>

<llo_original>
// kernel: masked_batch_norm_2d.1
$region0: #{masked_batch_norm_2d.1}
  #allocation0 [shape = 'u32[]', space=smem, size = 0x4, offset = 0x4, fixed_abs, tag = 'smem constant byte address 0x4 - core index']
  #allocation1 [shape = 'u32[72,128]{1,0:T(1,128)}', space=vmem, size = 0x9000, scoped, tag = 'internal scratch']
  %s0 = inlined_call_operand.vmem [shape: f32[2,16,256], index: 0, kind: input, shape index: {}]
  %s1 = inlined_call_operand.vmem [shape: f32[16,1], index: 1, kind: input, shape index: {}]
  %s2 = inlined_call_operand.vmem [shape: f32[16,1], index: 2, kind: input, shape index: {}]
  %s3 = inlined_call_operand.vmem [shape: f32[2,16,256], index: 3, kind: output, shape index: {}]
  %s4 = sld [smem:[#allocation0]]
  $region22: #{masked_batch_norm_2d.1} parent=0
    _
  %s6 = ssub.s32 1, %s4
  %s7 = scalar_select 0, %s6, %s4
  // Predicated region
  $region2: #{masked_batch_norm_2d.1} parent=0 // pred_check
    _
  $region3: #{masked_batch_norm_2d.1} parent=0 // pred_check_branch
    %9 = sbr.rel (0) target = $region5
  $region4: #{masked_batch_norm_2d.1} parent=0 // pred_region
    _
  $region5: #{masked_batch_norm_2d.1} parent=0 // pred_fallthru
    _
  // Predicated region
  $region6: #{masked_batch_norm_2d.1} parent=0 // pred_check
    _
  $region7: #{masked_batch_norm_2d.1} parent=0 // pred_check_branch
    %11 = sbr.rel (0) target = $region9
  $region8: #{masked_batch_norm_2d.1} parent=0 // pred_region
    _
  $region9: #{masked_batch_norm_2d.1} parent=0 // pred_fallthru
    _
  // Predicated region
  $region10: #{masked_batch_norm_2d.1} parent=0 // pred_check
    _
  $region11: #{masked_batch_norm_2d.1} parent=0 // pred_check_branch
    %13 = sbr.rel (0) target = $region13
  $region12: #{masked_batch_norm_2d.1} parent=0 // pred_region
    _
  $region13: #{masked_batch_norm_2d.1} parent=0 // pred_fallthru
    _
  %v14 = vld [vmem:[%s0] sm:$0xff]
  %v15 = vld [vmem:[%s0 + $0x8] sm:$0xff]
  %v16 = vld [vmem:[%s0 + $0x10] sm:$0xff]
  %v17 = vld [vmem:[%s0 + $0x18] sm:$0xff]
  %vm18 = vcmask 1042432
  %v19 = vsel %vm18, %v16, 0.0
  %v20 = vadd.f32 %v14, %v19
  %v21 = vrot.slane %v20, 4
  %v22 = vadd.f32 %v20, %v21
  %v23 = vrot.slane %v22, 2
  %v24 = vadd.f32 %v22, %v23
  %v25 = vrot.slane %v24, 1
  %v26 = vadd.f32 %v24, %v25
  %v27 = vsel %vm18, %v17, 0.0
  %v28 = vadd.f32 %v15, %v27
  %v29 = vrot.slane %v28, 4
  %v30 = vadd.f32 %v28, %v29
  %v31 = vrot.slane %v30, 2
  %v32 = vadd.f32 %v30, %v31
  %v33 = vrot.slane %v32, 1
  %v34 = vadd.f32 %v32, %v33
  %vm35 = vcmp.ne.f32.partialorder %v26, 0.0
  %vm36 = vcmp.ne.f32.partialorder %v34, 0.0
  %v37 = vsel %vm35, 1, 0
  %v38 = vsel %vm36, 1, 0
  %v39 = vcvt.s32.f32 %v37
  %v40 = vcvt.s32.f32 %v38
  %v41 = vmul.f32 %v14, %v39
  %v42 = vmul.f32 %v15, %v40
  %v43 = vmul.f32 %v16, %v39
  %v44 = vmul.f32 %v17, %v40
  %v45 = vadd.f32 %v39, %v40
  %46 = vadd.xlane.f32.xlu0 %v45
  %v47 = vpop.xlane.xlu0 %46
  %v48 = vadd.f32 %v47, 0.0
  %v49 = vadd.f32 %v41, %v42
  %50 = vadd.xlane.f32.xlu0 %v49
  %v51 = vpop.xlane.xlu0 %50
  %v52 = vadd.f32 %v43, %v44
  %53 = vadd.xlane.f32.xlu0 %v52
  %v54 = vpop.xlane.xlu0 %53
  %v55 = vadd.f32 %v51, 0.0
  %v56 = vadd.f32 %v54, 0.0
  %v57 = vmul.f32 %v41, %v14
  %v58 = vmul.f32 %v42, %v15
  %v59 = vmul.f32 %v43, %v16
  %v60 = vmul.f32 %v44, %v17
  %v61 = vadd.f32 %v57, %v58
  %62 = vadd.xlane.f32.xlu0 %v61
  %v63 = vpop.xlane.xlu0 %62
  %v64 = vadd.f32 %v59, %v60
  %65 = vadd.xlane.f32.xlu0 %v64
  %v66 = vpop.xlane.xlu0 %65
  %v67 = vadd.f32 %v63, 0.0
  %v68 = vadd.f32 %v66, 0.0
  %s69 = scalar_lea.vmem %s0, 32
  %v70 = vld [vmem:[%s69] sm:$0xff]
  %v71 = vld [vmem:[%s69 + $0x8] sm:$0xff]
  %v72 = vld [vmem:[%s69 + $0x10] sm:$0xff]
  %v73 = vld [vmem:[%s69 + $0x18] sm:$0xff]
  %v74 = vsel %vm18, %v72, 0.0
  %v75 = vadd.f32 %v70, %v74
  %v76 = vrot.slane %v75, 4
  %v77 = vadd.f32 %v75, %v76
  %v78 = vrot.slane %v77, 2
  %v79 = vadd.f32 %v77, %v78
  %v80 = vrot.slane %v79, 1
  %v81 = vadd.f32 %v79, %v80
  %v82 = vsel %vm18, %v73, 0.0
  %v83 = vadd.f32 %v71, %v82
  %v84 = vrot.slane %v83, 4
  %v85 = vadd.f32 %v83, %v84
  %v86 = vrot.slane %v85, 2
  %v87 = vadd.f32 %v85, %v86
  %v88 = vrot.slane %v87, 1
  %v89 = vadd.f32 %v87, %v88
  %vm90 = vcmp.ne.f32.partialorder %v81, 0.0
  %vm91 = vcmp.ne.f32.partialorder %v89, 0.0
  %v92 = vsel %vm90, 1, 0
  %v93 = vsel %vm91, 1, 0
  %v94 = vcvt.s32.f32 %v92
  %v95 = vcvt.s32.f32 %v93
  %v96 = vmul.f32 %v70, %v94
  %v97 = vmul.f32 %v71, %v95
  %v98 = vmul.f32 %v72, %v94
  %v99 = vmul.f32 %v73, %v95
  %v100 = vadd.f32 %v94, %v95
  %101 = vadd.xlane.f32.xlu0 %v100
  %v102 = vpop.xlane.xlu0 %101
  %v103 = vadd.f32 %v48, %v102
  %v104 = vadd.f32 %v96, %v97
  %105 = vadd.xlane.f32.xlu0 %v104
  %v106 = vpop.xlane.xlu0 %105
  %v107 = vadd.f32 %v98, %v99
  %108 = vadd.xlane.f32.xlu0 %v107
  %v109 = vpop.xlane.xlu0 %108
  %v110 = vadd.f32 %v55, %v106
  %v111 = vadd.f32 %v56, %v109
  %v112 = vmul.f32 %v96, %v70
  %v113 = vmul.f32 %v97, %v71
  %v114 = vmul.f32 %v98, %v72
  %v115 = vmul.f32 %v99, %v73
  %v116 = vadd.f32 %v112, %v113
  %117 = vadd.xlane.f32.xlu0 %v116
  %v118 = vpop.xlane.xlu0 %117
  %v119 = vadd.f32 %v114, %v115
  %120 = vadd.xlane.f32.xlu0 %v119
  %v121 = vpop.xlane.xlu0 %120
  %v122 = vadd.f32 %v67, %v118
  %v123 = vadd.f32 %v68, %v121
  %v124 = vadd.f32 %v103, 1e-05
  %v125 = vrcp.pop %v124
  %v126 = vmul.f32 %v124, %v125
  %v127 = vsub.f32 1.0, %v126
  %v128 = vmul.f32 %v125, %v127
  %v129 = vadd.f32 %v125, %v128
  %vm130 = vweird.f32 %v124
  %vm131 = vweird.f32 %v125
  %vm132 = vmor %vm130, %vm131
  %v133 = vsel %vm132, %v125, %v129
  %v134 = vand.u32 2147483647, %v124
  %vm135 = vcmp.eq.f32.partialorder %v134, 8.507059e+37
  %v136 = vand.u32 %v124, 2147483648
  %v137 = vor.u32 1.1754944e-38, %v136
  %v138 = vsel %vm135, %v137, %v133
  %v139 = vmul.f32 %v110, %v138
  %v140 = vmul.f32 %v111, %v138
  %v141 = vmul.f32 %v139, 2.0
  %v142 = vmul.f32 %v140, 2.0
  %v143 = vmul.f32 %v141, %v110
  %v144 = vmul.f32 %v142, %v111
  %v145 = vsub.f32 %v122, %v143
  %v146 = vsub.f32 %v123, %v144
  %v147 = vmul.f32 %v139, %v139
  %v148 = vmul.f32 %v140, %v140
  %v149 = vmul.f32 %v147, %v103
  %v150 = vmul.f32 %v148, %v103
  %v151 = vadd.f32 %v145, %v149
  %v152 = vadd.f32 %v146, %v150
  %v153 = vmul.f32 %v151, %v138
  %v154 = vmul.f32 %v152, %v138
  %v155 = vmax.f32 %v153, 0.0
  %v156 = vmax.f32 %v154, 0.0
  %v157 = vld [vmem:[%s1] sm:$0xff]
  %v158 = vld [vmem:[%s1 + $0x8] sm:$0xff]
  %v159 = vadd.f32 %v155, 1e-05
  %v160 = vadd.f32 %v156, 1e-05
  %v161 = vrsqrt.pop %v159
  %v162 = vmul.f32 %v161, %v159
  %v163 = vmul.f32 %v162, %v161
  %v164 = vmul.f32 0.5, %v163
  %v165 = vsub.f32 1.5, %v164
  %v166 = vmul.f32 %v161, %v165
  %vm167 = vweird.f32 %v159
  %vm168 = vweird.f32 %v161
  %vm169 = vmor %vm167, %vm168
  %v170 = vsel %vm169, %v161, %v166
  %v171 = vrsqrt.pop %v160
  %v172 = vmul.f32 %v171, %v160
  %v173 = vmul.f32 %v172, %v171
  %v174 = vmul.f32 0.5, %v173
  %v175 = vsub.f32 1.5, %v174
  %v176 = vmul.f32 %v171, %v175
  %vm177 = vweird.f32 %v160
  %vm178 = vweird.f32 %v171
  %vm179 = vmor %vm177, %vm178
  %v180 = vsel %vm179, %v171, %v176
  %v181 = vmul.f32 %v157, %v170
  %v182 = vmul.f32 %v158, %v180
  %v183 = vld [vmem:[%s2] sm:$0xff]
  %v184 = vld [vmem:[%s2 + $0x8] sm:$0xff]
  %v185 = vmul.f32 %v139, %v181
  %v186 = vmul.f32 %v140, %v182
  %v187 = vsub.f32 %v183, %v185
  %v188 = vsub.f32 %v184, %v186
  %190 = vset.pattern.permute.xlu0 0
  %191 = vperm.xlu0 %190, %v181
  %v192 = vpop.permute.xlu0 %191
  %195 = vset.pattern.permute.xlu0 0
  %196 = vperm.xlu0 %195, %v182
  %v197 = vpop.permute.xlu0 %196
  %v199 = vmul.f32 %v14, %v192
  %v200 = vmul.f32 %v15, %v192
  %v201 = vmul.f32 %v16, %v197
  %v202 = vmul.f32 %v17, %v197
  %204 = vset.pattern.permute.xlu0 0
  %205 = vperm.xlu0 %204, %v187
  %v206 = vpop.permute.xlu0 %205
  %209 = vset.pattern.permute.xlu0 0
  %210 = vperm.xlu0 %209, %v188
  %v211 = vpop.permute.xlu0 %210
  %v213 = vadd.f32 %v199, %v206
  %v214 = vadd.f32 %v200, %v206
  %v215 = vadd.f32 %v201, %v211
  %v216 = vadd.f32 %v202, %v211
  %217 = vst [vmem:[%s3] sm:$0xff] %v213
  %218 = vst [vmem:[%s3 + $0x8] sm:$0xff] %v214
  %219 = vst [vmem:[%s3 + $0x10] sm:$0xff] %v215
  %220 = vst [vmem:[%s3 + $0x18] sm:$0xff] %v216
  %v221 = vld [vmem:[%s69] sm:$0xff]
  %v222 = vld [vmem:[%s69 + $0x8] sm:$0xff]
  %v223 = vld [vmem:[%s69 + $0x10] sm:$0xff]
  %v224 = vld [vmem:[%s69 + $0x18] sm:$0xff]
  %v225 = vmul.f32 %v221, %v192
  %v226 = vmul.f32 %v222, %v192
  %v227 = vmul.f32 %v223, %v197
  %v228 = vmul.f32 %v224, %v197
  %v229 = vadd.f32 %v225, %v206
  %v230 = vadd.f32 %v226, %v206
  %v231 = vadd.f32 %v227, %v211
  %v232 = vadd.f32 %v228, %v211
  %s233 = scalar_lea.vmem %s3, 32
  %234 = vst [vmem:[%s233] sm:$0xff] %v229
  %235 = vst [vmem:[%s233 + $0x8] sm:$0xff] %v230
  %236 = vst [vmem:[%s233 + $0x10] sm:$0xff] %v231
  %237 = vst [vmem:[%s233 + $0x18] sm:$0xff] %v232
  // Predicated region
  $region14: #{masked_batch_norm_2d.1} parent=0 // pred_check
    _
  $region15: #{masked_batch_norm_2d.1} parent=0 // pred_check_branch
    %239 = sbr.rel (0) target = $region17
  $region16: #{masked_batch_norm_2d.1} parent=0 // pred_region
    _
  $region17: #{masked_batch_norm_2d.1} parent=0 // pred_fallthru
    _
  // Predicated region
  $region18: #{masked_batch_norm_2d.1} parent=0 // pred_check
    _
  $region19: #{masked_batch_norm_2d.1} parent=0 // pred_check_branch
    %241 = sbr.rel (0) target = $region21
  $region20: #{masked_batch_norm_2d.1} parent=0 // pred_region
    _
  $region21: #{masked_batch_norm_2d.1} parent=0 // pred_fallthru
    _

</llo_original>
